<compile_context>
chip_gen: v7x
topology: tpu7x:2x2x1
jax: 0.10.0
libtpu: 0.0.40
codegen_flags: <defaults>
</compile_context>

<pallas_src>
import functools
import math

import jax
import jax.numpy as jnp
from jax.experimental import pallas as pl
from jax.experimental.pallas import tpu as pltpu


def _round_up(a, m):
    return (a + m - 1) // m * m


def _round_down(a, m):
    return a // m * m


def _block_budget_bytes():
    """Per-block byte budget, sized per TPU generation (perf-review guidance)."""
    try:
        kind = jax.devices()[0].device_kind.lower()
    except Exception:
        kind = ""
    if "v5" in kind:
        return 2 << 20          # v5e: ~0.82 TB/s HBM, 16 MiB scoped-VMEM default
    if "v6" in kind:
        return 8 << 20          # v6e: 128 MiB VMEM, big blocks amortize step cost
    if "v7" in kind:
        return 4 << 20          # v7x: 64 MiB physical VMEM -> keep headroom
    return 4 << 20              # unknown backend / interpret mode


# ----------------------------- Pallas kernel ------------------------------ #

def _dropsample_kernel(scale_ref, x_ref, o_ref):
    # scale_ref: (tb, 1) f32 per-sample keep scale (0 or 1/(1-prob)),
    # x_ref/o_ref: (tb, tf) blocks of the flattened (B, F) tensor.
    # Multiply promotes to f32 for sub-32-bit inputs; cast only the product.
    o_ref[...] = (x_ref[...] * scale_ref[...]).astype(o_ref.dtype)


# ------------------------------ JAX wrapper -------------------------------- #

def dropsample_pallas(x, prob, *, training=True, seed=0, donate_x=False):
    """Pallas equivalent of Dropsample.forward (x: any shape with batch first)."""
    if prob == 0.0 or not training:
        return x                                          # identity fast path

    B = x.shape[0]
    F = max(1, int(math.prod(x.shape[1:])))
    itemsize = jnp.dtype(x.dtype).itemsize
    sublane = max(8, 32 // itemsize)                      # 8 f32 / 16 bf16 / 32 int8

    budget = _block_budget_bytes()

    # Feature tile: whole F per block when a minimal-height slab fits the
    # budget (block dim == full array dim is exempt from the 128 rule),
    # otherwise a multiple-of-128 chunk with the last chunk ragged-masked.
    if F <= 128 or F * itemsize * sublane <= budget:
        tf = F
    else:
        tf = max(128, _round_down(budget // (sublane * itemsize), 128))
        tf = min(tf, _round_down(F, 128))

    # Batch tile: fill the byte budget; multiple of the sublane packing unless
    # a single tile covers all of B (full-dim exemption).
    tb = max(1, budget // (tf * itemsize))
    if tb >= B:
        tb = B
    else:
        tb = max(sublane, _round_down(tb, sublane))

    grid = (pl.cdiv(B, tb), pl.cdiv(F, tf))
    vmem_limit = int(min(max(6 * budget, 32 << 20), 64 << 20))

    # Per-sample keep scale (tiny, O(B)) drawn host-side with jax.random so it
    # is portable (no TPU-only PRNG primitives) and identical across F tiles.
    key = jax.random.PRNGKey(seed)
    u = jax.random.uniform(key, (B,), dtype=jnp.float32)
    scale = jnp.where(u > jnp.float32(prob),
                      jnp.float32(1.0 / (1.0 - prob)),
                      jnp.float32(0.0)).reshape(B, 1)

    xf = x.reshape(B, F)                                  # contiguous: free reshape

    out = pl.pallas_call(
        _dropsample_kernel,
        out_shape=jax.ShapeDtypeStruct((B, F), x.dtype),
        grid=grid,
        in_specs=[
            pl.BlockSpec((tb, 1), lambda i, j: (i, 0)),   # per-sample scale
            pl.BlockSpec((tb, tf), lambda i, j: (i, j)),  # x block
        ],
        out_specs=pl.BlockSpec((tb, tf), lambda i, j: (i, j)),
        compiler_params=pltpu.CompilerParams(
            dimension_semantics=("parallel", "parallel"),
            vmem_limit_bytes=vmem_limit),
        cost_estimate=pl.CostEstimate(
            flops=B * F,
            transcendentals=0,
            bytes_accessed=2 * B * F * itemsize + B * 4),
        input_output_aliases=({1: 0} if donate_x else {}),
    )(scale, xf)

    return out.reshape(x.shape)


# ---------------------------------- main ----------------------------------- #

if __name__ == "__main__":
    key = jax.random.PRNGKey(0)
    # (B, C, H, W) input, channels-style layout like the torch module.
    x = jax.random.normal(key, (2, 4, 16, 16), dtype=jnp.float32)
    prob = 0.25

    # Eval mode / prob == 0 -> identity (matches the torch early-return).
    assert jnp.array_equal(dropsample_pallas(x, prob, training=False), x)
    assert jnp.array_equal(dropsample_pallas(x, 0.0, training=True), x)

    # Training path.
    y = jax.block_until_ready(dropsample_pallas(x, prob, training=True, seed=0))
    assert y.shape == x.shape and y.dtype == x.dtype

    # Determinism: same seed -> same mask -> same output.
    y2 = jax.block_until_ready(dropsample_pallas(x, prob, training=True, seed=0))
    assert jnp.array_equal(y, y2)

    # Exact reference (same RNG stream as the wrapper).
    u = jax.random.uniform(jax.random.PRNGKey(0), (x.shape[0],), dtype=jnp.float32)
    scale_ref = jnp.where(u > prob, 1.0 / (1.0 - prob), 0.0)
    ref = x * scale_ref.reshape(-1, 1, 1, 1)
    assert jnp.allclose(y, ref, rtol=1e-6, atol=1e-6)

    # Per-sample invariant: every sample is either all-zero (dropped) or kept
    # and scaled by exactly 1 / (1 - prob).
    xf = x.reshape(x.shape[0], -1)
    yf = y.reshape(x.shape[0], -1)
    kept = xf / (1.0 - prob)
    for b in range(x.shape[0]):
        is_kept = bool(jnp.allclose(yf[b], kept[b], rtol=1e-6, atol=1e-6))
        is_dropped = bool(jnp.max(jnp.abs(yf[b])) == 0.0)
        assert is_kept or is_dropped, f"sample {b} violates dropsample invariant"

    # Unaligned shape + bf16 path (exercises ragged blocks / sublane packing).
    xb = jax.random.normal(jax.random.PRNGKey(1), (3, 5, 7, 9), dtype=jnp.bfloat16)
    yb = jax.block_until_ready(dropsample_pallas(xb, 0.5, training=True, seed=3))
    ub = jax.random.uniform(jax.random.PRNGKey(3), (3,), dtype=jnp.float32)
    sb = jnp.where(ub > 0.5, 2.0, 0.0)
    refb = (xb.astype(jnp.float32) * sb.reshape(-1, 1, 1, 1)).astype(jnp.bfloat16)
    assert yb.shape == xb.shape and yb.dtype == xb.dtype
    assert jnp.allclose(yb.astype(jnp.float32), refb.astype(jnp.float32),
                        rtol=1e-2, atol=1e-2)

    print("KERNEL_OK")
</pallas_src>

<mosaic_0001>
module attributes {stable_mosaic.version = 11 : i64} {
  func.func @_dropsample_kernel(%arg0: i32, %arg1: i32, %arg2: memref<2x1xf32, #tpu.memory_space<vmem>>, %arg3: memref<2x1024xf32, #tpu.memory_space<vmem>>, %arg4: memref<2x1024xf32, #tpu.memory_space<vmem>>) attributes {dimension_semantics = [#tpu.dimension_semantics<parallel>, #tpu.dimension_semantics<parallel>], iteration_bounds = array<i64: 1, 1>, scalar_prefetch = 0 : i64, scratch_operands = 0 : i64, tpu.core_type = #tpu.core_type<tc>, window_params = [{transform_indices = @transform_0, window_bounds = array<i64: 2, 1>}, {transform_indices = @transform_1, window_bounds = array<i64: 2, 1024>}, {transform_indices = @transform_2, window_bounds = array<i64: 2, 1024>}]} {
    %c0 = arith.constant 0 : index
    %c0_0 = arith.constant 0 : index
    %0 = vector.load %arg3[%c0, %c0_0] : memref<2x1024xf32, #tpu.memory_space<vmem>>, vector<2x1024xf32>
    %c0_1 = arith.constant 0 : index
    %c0_2 = arith.constant 0 : index
    %1 = vector.load %arg2[%c0_1, %c0_2] : memref<2x1xf32, #tpu.memory_space<vmem>>, vector<2x1xf32>
    %2 = vector.broadcast %1 : vector<2x1xf32> to vector<2x1024xf32>
    %3 = arith.mulf %0, %2 : vector<2x1024xf32>
    %c0_3 = arith.constant 0 : index
    %c0_4 = arith.constant 0 : index
    %4 = vector.load %arg4[%c0_3, %c0_4] : memref<2x1024xf32, #tpu.memory_space<vmem>>, vector<2x1024xf32>
    tpu.vector_store %arg4[%c0_3, %c0_4], %3 {strides = array<i32>} : memref<2x1024xf32, #tpu.memory_space<vmem>>, vector<2x1024xf32>,
    return
  }
  func.func @transform_0(%arg0: i32, %arg1: i32) -> (i32, i32) {
    %c0_i32 = arith.constant 0 : i32
    %c0_i32_0 = arith.constant 0 : i32
    return %arg0, %c0_i32 : i32, i32
  }
  func.func @transform_1(%arg0: i32, %arg1: i32) -> (i32, i32) {
    %c0_i32 = arith.constant 0 : i32
    return %arg0, %arg1 : i32, i32
  }
  func.func @transform_2(%arg0: i32, %arg1: i32) -> (i32, i32) {
    %c0_i32 = arith.constant 0 : i32
    return %arg0, %arg1 : i32, i32
  }
}

</mosaic_0001>

<llo_original>
// kernel: tpu_custom_call.1
$region0: #{tpu_custom_call.1}
  #allocation0 [shape = 'u32[]', space=smem, size = 0x4, offset = 0x4, fixed_abs, tag = 'smem constant byte address 0x4 - core index']
  #allocation1 [shape = 'u32[144,128]{1,0:T(1,128)}', space=vmem, size = 0x12000, scoped, tag = 'internal scratch']
  %s0 = inlined_call_operand.vmem [shape: f32[2,1], index: 0, kind: input, shape index: {}]
  %s1 = inlined_call_operand.hbm [shape: f32[2,1024], index: 1, kind: input, shape index: {}]
  %s2 = inlined_call_operand.hbm [shape: f32[2,1024], index: 2, kind: output, shape index: {}]
  %s3 = sld [smem:[#allocation0]]
  $region22: #{tpu_custom_call.1} parent=0
    _
  %s5 = ssub.s32 1, %s3
  %s6 = scalar_select 0, %s5, %s3
  $region1: #{tpu_custom_call.1} parent=0
    #allocation2 [shape = 'u8[8192]{0}', space=vmem, size = 0x2000, scoped, tag = 'input window, operand 1, single buffered']
    #allocation3 [shape = 's32[1]{0}', space=sflag, size = 0x4, scoped, tag = 'scoped memory for tpu_custom_call.1']
    #allocation4 [shape = 's32[1]{0}', space=sflag, size = 0x4, scoped, tag = 'scoped memory for tpu_custom_call.1']
    #allocation5 [shape = 'u8[8192]{0}', space=vmem, size = 0x2000, scoped, tag = 'output window, operand 0, single buffered']
    %7 = vsyncpa [#allocation3], 0
    %8 = vsyncpa [#allocation4], 0
    // Predicated region
    $region2: #{tpu_custom_call.1} parent=1 // pred_check
      _
    $region3: #{tpu_custom_call.1} parent=1 // pred_check_branch
      %10 = sbr.rel (0) target = $region5
    $region4: #{tpu_custom_call.1} parent=1 // pred_region
      _
    $region5: #{tpu_custom_call.1} parent=1 // pred_fallthru
      _
    // Predicated region
    $region6: #{tpu_custom_call.1} parent=1 // pred_check
      _
    $region7: #{tpu_custom_call.1} parent=1 // pred_check_branch
      %12 = sbr.rel (0) target = $region9
    $region8: #{tpu_custom_call.1} parent=1 // pred_region
      %s14 = ssub.s32 256, 256
      %15 = vsyncadd [#allocation3], %s14
      %s17 = sshll.u32 [#allocation2], 4
      %s18 = int_to_ptr.vmem [resolvable:$true] %s17
      %20 = dma.hbm_to_vmem [thread:$0]  %s1, 256, %s18, [#allocation3]
    $region9: #{tpu_custom_call.1} parent=1 // pred_fallthru
      _
    // Predicated region
    $region10: #{tpu_custom_call.1} parent=1 // pred_check
      _
    $region11: #{tpu_custom_call.1} parent=1 // pred_check_branch
      %22 = sbr.rel (0) target = $region13
    $region12: #{tpu_custom_call.1} parent=1 // pred_region
      %23 = dma.done [#allocation3], 256
    $region13: #{tpu_custom_call.1} parent=1 // pred_fallthru
      _
    %v24 = vld [vmem:[#allocation2] sm:$0xff]
    %v25 = vld [vmem:[#allocation2 + $0x8] sm:$0xff]
    %v26 = vld [vmem:[%s0] sm:$0x3]
    %28 = vset.pattern.permute.xlu0 0
    %29 = vperm.xlu0 %28, %v26
    %v30 = vpop.permute.xlu0 %29
    %v32 = vunpack.c.l.s4 269488144
    %v33 = vunpack.c.0.s8 %v32
    %v34 = vlaneseq
    %v35 = vshrl.u32 %v34, 7
    %v36 = vsub.s32 %v33, %v35
    %v37 = vrot.slane %v30, %v36
    %v39 = vmul.f32 %v24, %v37
    %v40 = vmul.f32 %v25, %v37
    %41 = vst [vmem:[#allocation5] sm:$0xff] %v39
    %42 = vst [vmem:[#allocation5 + $0x8] sm:$0xff] %v40
    // Predicated region
    $region14: #{tpu_custom_call.1} parent=1 // pred_check
      _
    $region15: #{tpu_custom_call.1} parent=1 // pred_check_branch
      %44 = sbr.rel (0) target = $region17
    $region16: #{tpu_custom_call.1} parent=1 // pred_region
      %s46 = ssub.s32 256, 256
      %47 = vsyncadd [#allocation4], %s46
      %s49 = sshll.u32 [#allocation5], 4
      %s50 = int_to_ptr.vmem [resolvable:$true] %s49
      %52 = dma.vmem_to_hbm [thread:$0]  %s50, 256, %s2, [#allocation4]
    $region17: #{tpu_custom_call.1} parent=1 // pred_fallthru
      _
    // Predicated region
    $region18: #{tpu_custom_call.1} parent=1 // pred_check
      _
    $region19: #{tpu_custom_call.1} parent=1 // pred_check_branch
      %54 = sbr.rel (0) target = $region21
    $region20: #{tpu_custom_call.1} parent=1 // pred_region
      %55 = dma.done [#allocation4], 256
    $region21: #{tpu_custom_call.1} parent=1 // pred_fallthru
      _
    %56 = vsyncpa [#allocation3], 1
    %57 = vsyncpa [#allocation4], 1

</llo_original>
